<compile_context>
chip_gen: v7x
topology: tpu7x:2x2x1
jax: 0.10.0
libtpu: 0.0.40
codegen_flags: <defaults>
</compile_context>

<pallas_src>
import functools

import jax
import jax.numpy as jnp
from jax.experimental import pallas as pl
from jax.experimental.pallas import tpu as pltpu


def _critic_kernel(x_ref, w1_ref, b1_ref, w2_ref, b2_ref, w3_ref, b3_ref,
                   out_ref):
    # x_ref: [tb, D] row-major obs tile.  Weights are [out_feat, in_feat],
    # biases [out_feat, 1] (f32).  All matmuls keep the batch on the lane axis.
    cdt = w1_ref.dtype                      # compute/activation dtype (f32 or bf16)
    # Layer 1: contract obs_dim on the LAST axis of both operands:
    #   [H1, D] . [tb, D]^T -> [H1, tb]   (no wrapper-side transpose needed)
    dims = (((1,), (1,)), ((), ()))
    z1 = jax.lax.dot_general(w1_ref[...], x_ref[...], dims,
                             preferred_element_type=jnp.float32) + b1_ref[...]
    h1 = jnp.tanh(z1.astype(cdt))                                    # [H1, tb]
    z2 = jnp.dot(w2_ref[...], h1,
                 preferred_element_type=jnp.float32) + b2_ref[...]
    h2 = jnp.tanh(z2.astype(cdt))                                    # [H2, tb]
    v = jnp.dot(w3_ref[...], h2,
                preferred_element_type=jnp.float32) + b3_ref[...]    # [1,  tb]
    out_ref[...] = v.astype(out_ref.dtype)


def _round_up(x, m):
    return ((x + m - 1) // m) * m


def _choose_batch_tile(batch, batch_tile):
    """Lane-aligned (multiple-of-128) batch tile.

    If the whole padded batch fits in one tile, split it into two grid steps
    when possible so both v7x TensorCores get a 'parallel' step.
    """
    b128 = _round_up(batch, 128)
    tb_cap = max(128, _round_up(batch_tile, 128))
    if b128 <= tb_cap:
        if b128 >= 256:
            return _round_up(b128 // 2, 128)
        return b128
    return tb_cap


def mlp_critic_forward(obs, params, *, batch_tile=2048,
                       compute_dtype=jnp.float32):
    """obs: [B, obs_dim] float32.  params: w{1,2,3}: [in,out], b{1,2,3}: [1,out]."""
    B, D = obs.shape
    cdt = jnp.dtype(compute_dtype)

    # Transposed ("[out, in]") parameter layout for the batch-on-lanes kernel.
    w1t = params["w1"].T.astype(cdt)            # [H1, D]
    w2t = params["w2"].T.astype(cdt)            # [H2, H1]
    w3t = params["w3"].T.astype(cdt)            # [1,  H2]
    b1t = params["b1"].T.astype(jnp.float32)    # [H1, 1]  (biases stay f32:
    b2t = params["b2"].T.astype(jnp.float32)    #  added to the f32 MXU acc)
    b3t = params["b3"].T.astype(jnp.float32)    # [1,  1]

    tb = _choose_batch_tile(B, batch_tile)
    b_pad = _round_up(B, tb)

    obs_p = obs.astype(cdt)
    if b_pad != B:
        obs_p = jnp.pad(obs_p, ((0, b_pad - B), (0, 0)))

    grid = (b_pad // tb,)
    resident = lambda a: pl.BlockSpec(a.shape, lambda i: (0, 0))

    out = pl.pallas_call(
        _critic_kernel,
        out_shape=jax.ShapeDtypeStruct((1, b_pad), jnp.float32),
        grid=grid,
        in_specs=[
            # Row-major obs tile streams with a contiguous DMA; weights/biases
            # map to block (0,0) every step -> stay VMEM-resident.
            pl.BlockSpec((tb, D), lambda i: (i, 0)),
            resident(w1t), resident(b1t),
            resident(w2t), resident(b2t),
            resident(w3t), resident(b3t),
        ],
        out_specs=pl.BlockSpec((1, tb), lambda i: (0, i)),   # lane-dense output
        compiler_params=pltpu.CompilerParams(
            dimension_semantics=("parallel",)),
    )(obs_p, w1t, b1t, w2t, b2t, w3t, b3t)

    # [1, B_pad] -> [B]  (drops padded columns; matches torch.squeeze(v, -1))
    return out[0, :B]


def init_params(key, obs_dim, hidden_sizes):
    """Deterministic init mimicking nn.Linear default (U(-1/sqrt(in), 1/sqrt(in)))."""
    sizes = [obs_dim] + list(hidden_sizes) + [1]
    params = {}
    for j in range(len(sizes) - 1):
        fan_in, fan_out = sizes[j], sizes[j + 1]
        key, kw, kb = jax.random.split(key, 3)
        bound = 1.0 / jnp.sqrt(fan_in)
        params[f"w{j + 1}"] = jax.random.uniform(
            kw, (fan_in, fan_out), jnp.float32, -bound, bound)
        params[f"b{j + 1}"] = jax.random.uniform(
            kb, (1, fan_out), jnp.float32, -bound, bound)
    return params


def reference_forward(obs, params):
    h1 = jnp.tanh(obs @ params["w1"] + params["b1"])
    h2 = jnp.tanh(h1 @ params["w2"] + params["b2"])
    v = h2 @ params["w3"] + params["b3"]
    return jnp.squeeze(v, axis=-1)


if __name__ == "__main__":
    obs_dim = 16
    hidden_sizes = (32, 32)

    key = jax.random.PRNGKey(0)
    k_obs, k_params, k_obs2 = jax.random.split(key, 3)
    params = init_params(k_params, obs_dim, hidden_sizes)

    fwd = jax.jit(functools.partial(mlp_critic_forward, params=params))

    # Small batch (typical single-step critic call).
    obs = jax.random.normal(k_obs, (8, obs_dim), dtype=jnp.float32)
    v = jax.block_until_ready(fwd(obs))
    v_ref = reference_forward(obs, params)
    assert v.shape == (8,), v.shape
    assert jnp.allclose(v, v_ref, atol=1e-5, rtol=1e-5), (v, v_ref)

    # Ragged batch: exercises padding + a >=2-step "parallel" grid (v7x megacore).
    obs2 = jax.random.normal(k_obs2, (300, obs_dim), dtype=jnp.float32)
    v2 = jax.block_until_ready(fwd(obs2))
    v2_ref = reference_forward(obs2, params)
    assert v2.shape == (300,), v2.shape
    assert jnp.allclose(v2, v2_ref, atol=1e-5, rtol=1e-5), (v2, v2_ref)

    # Optional bf16 fast path (v6e/v7x): bf16 obs/weights + bf16 tanh, f32 acc.
    fwd_bf16 = jax.jit(functools.partial(mlp_critic_forward, params=params,
                                         compute_dtype=jnp.bfloat16))
    v3 = jax.block_until_ready(fwd_bf16(obs2))
    assert v3.shape == (300,), v3.shape
    assert jnp.allclose(v3, v2_ref, atol=1e-1, rtol=1e-1), (v3, v2_ref)

    print("KERNEL_OK")
</pallas_src>

<mosaic_0001>
module attributes {stable_mosaic.version = 11 : i64} {
  func.func @_critic_kernel(%arg0: i32, %arg1: memref<128x16xf32, #tpu.memory_space<vmem>>, %arg2: memref<32x16xf32, #tpu.memory_space<vmem>>, %arg3: memref<32x1xf32, #tpu.memory_space<vmem>>, %arg4: memref<32x32xf32, #tpu.memory_space<vmem>>, %arg5: memref<32x1xf32, #tpu.memory_space<vmem>>, %arg6: memref<1x32xf32, #tpu.memory_space<vmem>>, %arg7: memref<1x1xf32, #tpu.memory_space<vmem>>, %arg8: memref<1x128xf32, #tpu.memory_space<vmem>>) attributes {dimension_semantics = [#tpu.dimension_semantics<parallel>], iteration_bounds = array<i64: 1>, scalar_prefetch = 0 : i64, scratch_operands = 0 : i64, tpu.core_type = #tpu.core_type<tc>, window_params = [{transform_indices = @transform_0, window_bounds = array<i64: 128, 16>}, {pipeline_mode = #tpu.pipeline_mode<synchronous>, transform_indices = @transform_1, window_bounds = array<i64: 32, 16>}, {pipeline_mode = #tpu.pipeline_mode<synchronous>, transform_indices = @transform_2, window_bounds = array<i64: 32, 1>}, {pipeline_mode = #tpu.pipeline_mode<synchronous>, transform_indices = @transform_3, window_bounds = array<i64: 32, 32>}, {pipeline_mode = #tpu.pipeline_mode<synchronous>, transform_indices = @transform_4, window_bounds = array<i64: 32, 1>}, {pipeline_mode = #tpu.pipeline_mode<synchronous>, transform_indices = @transform_5, window_bounds = array<i64: 1, 32>}, {pipeline_mode = #tpu.pipeline_mode<synchronous>, transform_indices = @transform_6, window_bounds = array<i64: 1, 1>}, {transform_indices = @transform_7, window_bounds = array<i64: 1, 128>}]} {
    %c0 = arith.constant 0 : index
    %c0_0 = arith.constant 0 : index
    %0 = vector.load %arg2[%c0, %c0_0] : memref<32x16xf32, #tpu.memory_space<vmem>>, vector<32x16xf32>
    %c0_1 = arith.constant 0 : index
    %c0_2 = arith.constant 0 : index
    %1 = vector.load %arg1[%c0_1, %c0_2] : memref<128x16xf32, #tpu.memory_space<vmem>>, vector<128x16xf32>
    %cst = arith.constant dense<0.000000e+00> : vector<32x128xf32>
    %2 = tpu.matmul %0, %1, %cst {dimension_numbers = #tpu.dot_dimension_numbers<[1], [1], [0], [0], [0, 0, 1, 0], [], []>} : vector<32x16xf32>, vector<128x16xf32>, vector<32x128xf32> -> vector<32x128xf32>
    %c0_3 = arith.constant 0 : index
    %c0_4 = arith.constant 0 : index
    %3 = vector.load %arg3[%c0_3, %c0_4] : memref<32x1xf32, #tpu.memory_space<vmem>>, vector<32x1xf32>
    %4 = vector.broadcast %3 : vector<32x1xf32> to vector<32x128xf32>
    %5 = arith.addf %2, %4 : vector<32x128xf32>
    %6 = math.tanh %5 : vector<32x128xf32>
    %c0_5 = arith.constant 0 : index
    %c0_6 = arith.constant 0 : index
    %7 = vector.load %arg4[%c0_5, %c0_6] : memref<32x32xf32, #tpu.memory_space<vmem>>, vector<32x32xf32>
    %cst_7 = arith.constant dense<0.000000e+00> : vector<32x128xf32>
    %8 = tpu.matmul %7, %6, %cst_7 {dimension_numbers = #tpu.dot_dimension_numbers<[1], [0], [0], [1], [0, 0, 1, 1], [], []>} : vector<32x32xf32>, vector<32x128xf32>, vector<32x128xf32> -> vector<32x128xf32>
    %c0_8 = arith.constant 0 : index
    %c0_9 = arith.constant 0 : index
    %9 = vector.load %arg5[%c0_8, %c0_9] : memref<32x1xf32, #tpu.memory_space<vmem>>, vector<32x1xf32>
    %10 = vector.broadcast %9 : vector<32x1xf32> to vector<32x128xf32>
    %11 = arith.addf %8, %10 : vector<32x128xf32>
    %12 = math.tanh %11 : vector<32x128xf32>
    %c0_10 = arith.constant 0 : index
    %c0_11 = arith.constant 0 : index
    %13 = vector.load %arg6[%c0_10, %c0_11] : memref<1x32xf32, #tpu.memory_space<vmem>>, vector<1x32xf32>
    %cst_12 = arith.constant dense<0.000000e+00> : vector<1x128xf32>
    %14 = tpu.matmul %13, %12, %cst_12 {dimension_numbers = #tpu.dot_dimension_numbers<[1], [0], [0], [1], [0, 0, 1, 1], [], []>} : vector<1x32xf32>, vector<32x128xf32>, vector<1x128xf32> -> vector<1x128xf32>
    %c0_13 = arith.constant 0 : index
    %c0_14 = arith.constant 0 : index
    %15 = vector.load %arg7[%c0_13, %c0_14] : memref<1x1xf32, #tpu.memory_space<vmem>>, vector<1x1xf32>
    %16 = vector.broadcast %15 : vector<1x1xf32> to vector<1x128xf32>
    %17 = arith.addf %14, %16 : vector<1x128xf32>
    %c0_15 = arith.constant 0 : index
    %c0_16 = arith.constant 0 : index
    %18 = vector.load %arg8[%c0_15, %c0_16] : memref<1x128xf32, #tpu.memory_space<vmem>>, vector<1x128xf32>
    tpu.vector_store %arg8[%c0_15, %c0_16], %17 {strides = array<i32>} : memref<1x128xf32, #tpu.memory_space<vmem>>, vector<1x128xf32>,
    return
  }
  func.func @transform_0(%arg0: i32) -> (i32, i32) {
    %c0_i32 = arith.constant 0 : i32
    %c0_i32_0 = arith.constant 0 : i32
    return %arg0, %c0_i32 : i32, i32
  }
  func.func @transform_1(%arg0: i32) -> (i32, i32) {
    %c0_i32 = arith.constant 0 : i32
    %c0_i32_0 = arith.constant 0 : i32
    %c0_i32_1 = arith.constant 0 : i32
    return %c0_i32, %c0_i32_0 : i32, i32
  }
  func.func @transform_2(%arg0: i32) -> (i32, i32) {
    %c0_i32 = arith.constant 0 : i32
    %c0_i32_0 = arith.constant 0 : i32
    %c0_i32_1 = arith.constant 0 : i32
    return %c0_i32, %c0_i32_0 : i32, i32
  }
  func.func @transform_3(%arg0: i32) -> (i32, i32) {
    %c0_i32 = arith.constant 0 : i32
    %c0_i32_0 = arith.constant 0 : i32
    %c0_i32_1 = arith.constant 0 : i32
    return %c0_i32, %c0_i32_0 : i32, i32
  }
  func.func @transform_4(%arg0: i32) -> (i32, i32) {
    %c0_i32 = arith.constant 0 : i32
    %c0_i32_0 = arith.constant 0 : i32
    %c0_i32_1 = arith.constant 0 : i32
    return %c0_i32, %c0_i32_0 : i32, i32
  }
  func.func @transform_5(%arg0: i32) -> (i32, i32) {
    %c0_i32 = arith.constant 0 : i32
    %c0_i32_0 = arith.constant 0 : i32
    %c0_i32_1 = arith.constant 0 : i32
    return %c0_i32, %c0_i32_0 : i32, i32
  }
  func.func @transform_6(%arg0: i32) -> (i32, i32) {
    %c0_i32 = arith.constant 0 : i32
    %c0_i32_0 = arith.constant 0 : i32
    %c0_i32_1 = arith.constant 0 : i32
    return %c0_i32, %c0_i32_0 : i32, i32
  }
  func.func @transform_7(%arg0: i32) -> (i32, i32) {
    %c0_i32 = arith.constant 0 : i32
    %c0_i32_0 = arith.constant 0 : i32
    return %c0_i32, %arg0 : i32, i32
  }
}

</mosaic_0001>

<llo_original>
// kernel: mlp_critic_forward.1
$region0: #{mlp_critic_forward.1}
  #allocation0 [shape = 'u32[]', space=smem, size = 0x4, offset = 0x4, fixed_abs, tag = 'smem constant byte address 0x4 - core index']
  #allocation1 [shape = 'u32[144,128]{1,0:T(1,128)}', space=vmem, size = 0x12000, scoped, tag = 'internal scratch']
  #allocation2 [shape = 'f32[1,1]{1,0:T(1,128)S(1)}', space=vmem, size = 0x200, scoped, tag = 'scoped memory for mlp_critic_forward.1']
  %s0 = inlined_call_operand.vmem [shape: f32[128,16], index: 0, kind: input, shape index: {}]
  %s1 = inlined_call_operand.vmem [shape: f32[32,16], index: 1, kind: input, shape index: {}]
  %s2 = inlined_call_operand.vmem [shape: f32[32,1], index: 2, kind: input, shape index: {}]
  %s3 = inlined_call_operand.vmem [shape: f32[32,32], index: 3, kind: input, shape index: {}]
  %s4 = inlined_call_operand.vmem [shape: f32[32,1], index: 4, kind: input, shape index: {}]
  %s5 = inlined_call_operand.vmem [shape: f32[1,32], index: 5, kind: input, shape index: {}]
  %s6 = inlined_call_operand.<no memory space> [shape: f32[1,1], index: 6, kind: input, shape index: {}]
  %s7 = inlined_call_operand.vmem [shape: f32[1,128], index: 7, kind: output, shape index: {}]
  %s8 = sld [smem:[#allocation0]]
  $region38: #{mlp_critic_forward.1} parent=0
    _
  %s10 = ssub.s32 1, %s8
  %s11 = scalar_select 0, %s10, %s8
  %v12 = vstv %s6
  %13 = vst [vmem:[#allocation2] sm:$0x1] %v12
  // Predicated region
  $region2: #{mlp_critic_forward.1} parent=0 // pred_check
    _
  $region3: #{mlp_critic_forward.1} parent=0 // pred_check_branch
    %15 = sbr.rel (0) target = $region5
  $region4: #{mlp_critic_forward.1} parent=0 // pred_region
    _
  $region5: #{mlp_critic_forward.1} parent=0 // pred_fallthru
    _
  // Predicated region
  $region6: #{mlp_critic_forward.1} parent=0 // pred_check
    _
  $region7: #{mlp_critic_forward.1} parent=0 // pred_check_branch
    %17 = sbr.rel (0) target = $region9
  $region8: #{mlp_critic_forward.1} parent=0 // pred_region
    _
  $region9: #{mlp_critic_forward.1} parent=0 // pred_fallthru
    _
  // Predicated region
  $region10: #{mlp_critic_forward.1} parent=0 // pred_check
    _
  $region11: #{mlp_critic_forward.1} parent=0 // pred_check_branch
    %19 = sbr.rel (0) target = $region13
  $region12: #{mlp_critic_forward.1} parent=0 // pred_region
    _
  $region13: #{mlp_critic_forward.1} parent=0 // pred_fallthru
    _
  // Predicated region
  $region14: #{mlp_critic_forward.1} parent=0 // pred_check
    _
  $region15: #{mlp_critic_forward.1} parent=0 // pred_check_branch
    %21 = sbr.rel (0) target = $region17
  $region16: #{mlp_critic_forward.1} parent=0 // pred_region
    _
  $region17: #{mlp_critic_forward.1} parent=0 // pred_fallthru
    _
  // Predicated region
  $region18: #{mlp_critic_forward.1} parent=0 // pred_check
    _
  $region19: #{mlp_critic_forward.1} parent=0 // pred_check_branch
    %23 = sbr.rel (0) target = $region21
  $region20: #{mlp_critic_forward.1} parent=0 // pred_region
    _
  $region21: #{mlp_critic_forward.1} parent=0 // pred_fallthru
    _
  // Predicated region
  $region22: #{mlp_critic_forward.1} parent=0 // pred_check
    _
  $region23: #{mlp_critic_forward.1} parent=0 // pred_check_branch
    %25 = sbr.rel (0) target = $region25
  $region24: #{mlp_critic_forward.1} parent=0 // pred_region
    _
  $region25: #{mlp_critic_forward.1} parent=0 // pred_fallthru
    _
  // Predicated region
  $region26: #{mlp_critic_forward.1} parent=0 // pred_check
    _
  $region27: #{mlp_critic_forward.1} parent=0 // pred_check_branch
    %27 = sbr.rel (0) target = $region29
  $region28: #{mlp_critic_forward.1} parent=0 // pred_region
    _
  $region29: #{mlp_critic_forward.1} parent=0 // pred_fallthru
    _
  %v28 = vld [vmem:[%s1] sm:$0xff]
  %v29 = vld [vmem:[%s1 + $0x8] sm:$0xff]
  %v30 = vld [vmem:[%s1 + $0x10] sm:$0xff]
  %v31 = vld [vmem:[%s1 + $0x18] sm:$0xff]
  %v32 = vld [vmem:[%s0] sm:$0xff]
  %v33 = vld [vmem:[%s0 + $0x8] sm:$0xff]
  %v34 = vld [vmem:[%s0 + $0x10] sm:$0xff]
  %v35 = vld [vmem:[%s0 + $0x18] sm:$0xff]
  %v36 = vld [vmem:[%s0 + $0x20] sm:$0xff]
  %v37 = vld [vmem:[%s0 + $0x28] sm:$0xff]
  %v38 = vld [vmem:[%s0 + $0x30] sm:$0xff]
  %v39 = vld [vmem:[%s0 + $0x38] sm:$0xff]
  %v40 = vld [vmem:[%s0 + $0x40] sm:$0xff]
  %v41 = vld [vmem:[%s0 + $0x48] sm:$0xff]
  %v42 = vld [vmem:[%s0 + $0x50] sm:$0xff]
  %v43 = vld [vmem:[%s0 + $0x58] sm:$0xff]
  %v44 = vld [vmem:[%s0 + $0x60] sm:$0xff]
  %v45 = vld [vmem:[%s0 + $0x68] sm:$0xff]
  %v46 = vld [vmem:[%s0 + $0x70] sm:$0xff]
  %v47 = vld [vmem:[%s0 + $0x78] sm:$0xff]
  %v48 = vld [vmem:[%s2] sm:$0xff]
  %v49 = vld [vmem:[%s2 + $0x8] sm:$0xff]
  %v50 = vld [vmem:[%s2 + $0x10] sm:$0xff]
  %v51 = vld [vmem:[%s2 + $0x18] sm:$0xff]
  %53 = vset.pattern.permute.xlu0 0
  %54 = vperm.xlu0 %53, %v48
  %v55 = vpop.permute.xlu0 %54
  %58 = vset.pattern.permute.xlu0 0
  %59 = vperm.xlu0 %58, %v49
  %v60 = vpop.permute.xlu0 %59
  %63 = vset.pattern.permute.xlu0 0
  %64 = vperm.xlu0 %63, %v50
  %v65 = vpop.permute.xlu0 %64
  %68 = vset.pattern.permute.xlu0 0
  %69 = vperm.xlu0 %68, %v51
  %v70 = vpop.permute.xlu0 %69
  %vm72 = vcmask 130048
  %v74 = vsel %vm72, %v28, 0
  %v77 = vsel %vm72, %v29, 0
  %v80 = vsel %vm72, %v30, 0
  %v83 = vsel %vm72, %v31, 0
  %v86 = vsel %vm72, %v32, 0
  %v89 = vsel %vm72, %v33, 0
  %v92 = vsel %vm72, %v34, 0
  %v95 = vsel %vm72, %v35, 0
  %v98 = vsel %vm72, %v36, 0
  %v101 = vsel %vm72, %v37, 0
  %v104 = vsel %vm72, %v38, 0
  %v107 = vsel %vm72, %v39, 0
  %v110 = vsel %vm72, %v40, 0
  %v113 = vsel %vm72, %v41, 0
  %v116 = vsel %vm72, %v42, 0
  %v119 = vsel %vm72, %v43, 0
  %v122 = vsel %vm72, %v44, 0
  %v125 = vsel %vm72, %v45, 0
  %v128 = vsel %vm72, %v46, 0
  %v131 = vsel %vm72, %v47, 0
  %133 = vmatprep.subr.mxu0 0.0
  %134 = vmatpush1.xpose.msra.mxu0 %v86
  %135 = vmatprep.subr.mxu0 0.0
  %136 = vmatpush1.xpose.msra.mxu0 %v89
  %137 = vmatprep.subr.mxu0 0.0
  %138 = vmatpush1.xpose.msra.mxu0 %v92
  %139 = vmatprep.subr.mxu0 0.0
  %140 = vmatpush1.xpose.msra.mxu0 %v95
  %141 = vmatprep.subr.mxu0 0.0
  %142 = vmatpush1.xpose.msra.mxu0 %v98
  %143 = vmatprep.subr.mxu0 0.0
  %144 = vmatpush1.xpose.msra.mxu0 %v101
  %145 = vmatprep.subr.mxu0 0.0
  %146 = vmatpush1.xpose.msra.mxu0 %v104
  %147 = vmatprep.subr.mxu0 0.0
  %148 = vmatpush1.xpose.msra.mxu0 %v107
  %149 = vmatprep.subr.mxu0 0.0
  %150 = vmatpush1.xpose.msra.mxu0 %v110
  %151 = vmatprep.subr.mxu0 0.0
  %152 = vmatpush1.xpose.msra.mxu0 %v113
  %153 = vmatprep.subr.mxu0 0.0
  %154 = vmatpush1.xpose.msra.mxu0 %v116
  %155 = vmatprep.subr.mxu0 0.0
  %156 = vmatpush1.xpose.msra.mxu0 %v119
  %157 = vmatprep.subr.mxu0 0.0
  %158 = vmatpush1.xpose.msra.mxu0 %v122
  %159 = vmatprep.subr.mxu0 0.0
  %160 = vmatpush1.xpose.msra.mxu0 %v125
  %161 = vmatprep.subr.mxu0 0.0
  %162 = vmatpush1.xpose.msra.mxu0 %v128
  %163 = vmatprep.subr.mxu0 0.0
  %164 = vmatpush1.xpose.msra.mxu0 %v131
  %165 = vmatprep.subr.mxu0 0.0
  %166 = vmatpush1.xpose.msra.mxu0 0.0
  %167 = vmatprep.subr.mxu0 0.0
  %168 = vmatpush1.xpose.msra.mxu0 0.0
  %169 = vmatprep.subr.mxu0 0.0
  %170 = vmatpush1.xpose.msra.mxu0 0.0
  %171 = vmatprep.subr.mxu0 0.0
  %172 = vmatpush1.xpose.msra.mxu0 0.0
  %173 = vmatprep.subr.mxu0 0.0
  %174 = vmatpush1.xpose.msra.mxu0 0.0
  %175 = vmatprep.subr.mxu0 0.0
  %176 = vmatpush1.xpose.msra.mxu0 0.0
  %177 = vmatprep.subr.mxu0 0.0
  %178 = vmatpush1.xpose.msra.mxu0 0.0
  %179 = vmatprep.subr.mxu0 0.0
  %180 = vmatpush1.xpose.msra.mxu0 0.0
  %181 = vmatprep.subr.mxu0 0.0
  %182 = vmatpush1.xpose.msra.mxu0 0.0
  %183 = vmatprep.subr.mxu0 0.0
  %184 = vmatpush1.xpose.msra.mxu0 0.0
  %185 = vmatprep.subr.mxu0 0.0
  %186 = vmatpush1.xpose.msra.mxu0 0.0
  %187 = vmatprep.subr.mxu0 0.0
  %188 = vmatpush1.xpose.msra.mxu0 0.0
  %189 = vmatprep.subr.mxu0 0.0
  %190 = vmatpush1.xpose.msra.mxu0 0.0
  %191 = vmatprep.subr.mxu0 0.0
  %192 = vmatpush1.xpose.msra.mxu0 0.0
  %193 = vmatprep.subr.mxu0 0.0
  %194 = vmatpush1.xpose.msra.mxu0 0.0
  %195 = vmatprep.subr.mxu0 0.0
  %196 = vmatpush1.xpose.msra.mxu0 0.0
  %197 = vmatprep.mubr.f32.mxu0 0.0
  %198 = vmatmul.mubr.f32.gmra.mrb[0].mxu0 %v74
  %v199 = vpop.f32.mrb[0].mxu0
  %v200 = vadd.f32 %v55, %v199
  %v201 = vpop.f32.mrb[0].mxu0
  %202 = vmatprep.mubr.f32.mxu0 0.0
  %203 = vmatmul.mubr.f32.gmra.mrb[0].mxu0 %v77
  %v204 = vpop.f32.mrb[0].mxu0
  %v205 = vadd.f32 %v60, %v204
  %v206 = vpop.f32.mrb[0].mxu0
  %207 = vmatprep.mubr.f32.mxu0 0.0
  %208 = vmatmul.mubr.f32.gmra.mrb[0].mxu0 %v80
  %v209 = vpop.f32.mrb[0].mxu0
  %v210 = vadd.f32 %v65, %v209
  %v211 = vpop.f32.mrb[0].mxu0
  %212 = vmatprep.mubr.f32.mxu0 0.0
  %213 = vmatmul.mubr.f32.gmra.mrb[0].mxu0 %v83
  %v214 = vpop.f32.mrb[0].mxu0
  %v215 = vadd.f32 %v70, %v214
  %v216 = vpop.f32.mrb[0].mxu0
  %217 = vdwg.mxu0
  %v218 = vtanh.pop %v200
  %v219 = vtanh.pop %v205
  %v220 = vtanh.pop %v210
  %v221 = vtanh.pop %v215
  %v222 = vld [vmem:[%s3] sm:$0xff]
  %v223 = vld [vmem:[%s3 + $0x8] sm:$0xff]
  %v224 = vld [vmem:[%s3 + $0x10] sm:$0xff]
  %v225 = vld [vmem:[%s3 + $0x18] sm:$0xff]
  %v226 = vld [vmem:[%s4] sm:$0xff]
  %v227 = vld [vmem:[%s4 + $0x8] sm:$0xff]
  %v228 = vld [vmem:[%s4 + $0x10] sm:$0xff]
  %v229 = vld [vmem:[%s4 + $0x18] sm:$0xff]
  %231 = vset.pattern.permute.xlu0 0
  %232 = vperm.xlu0 %231, %v226
  %v233 = vpop.permute.xlu0 %232
  %236 = vset.pattern.permute.xlu0 0
  %237 = vperm.xlu0 %236, %v227
  %v238 = vpop.permute.xlu0 %237
  %241 = vset.pattern.permute.xlu0 0
  %242 = vperm.xlu0 %241, %v228
  %v243 = vpop.permute.xlu0 %242
  %246 = vset.pattern.permute.xlu0 0
  %247 = vperm.xlu0 %246, %v229
  %v248 = vpop.permute.xlu0 %247
  %vm250 = vcmask 261120
  %v252 = vsel %vm250, %v222, 0
  %v255 = vsel %vm250, %v223, 0
  %v258 = vsel %vm250, %v224, 0
  %v261 = vsel %vm250, %v225, 0
  %263 = vmatprep.subr.mxu0 0.0
  %264 = vmatpush1.msra.mxu0 %v218
  %265 = vmatprep.subr.mxu0 0.0
  %266 = vmatpush1.msra.mxu0 %v219
  %267 = vmatprep.subr.mxu0 0.0
  %268 = vmatpush1.msra.mxu0 %v220
  %269 = vmatprep.subr.mxu0 0.0
  %270 = vmatpush1.msra.mxu0 %v221
  %271 = vmatprep.subr.mxu0 0.0
  %272 = vmatpush1.msra.mxu0 0.0
  %273 = vmatprep.subr.mxu0 0.0
  %274 = vmatpush1.msra.mxu0 0.0
  %275 = vmatprep.subr.mxu0 0.0
  %276 = vmatpush1.msra.mxu0 0.0
  %277 = vmatprep.subr.mxu0 0.0
  %278 = vmatpush1.msra.mxu0 0.0
  %279 = vmatprep.subr.mxu0 0.0
  %280 = vmatpush1.msra.mxu0 0.0
  %281 = vmatprep.subr.mxu0 0.0
  %282 = vmatpush1.msra.mxu0 0.0
  %283 = vmatprep.subr.mxu0 0.0
  %284 = vmatpush1.msra.mxu0 0.0
  %285 = vmatprep.subr.mxu0 0.0
  %286 = vmatpush1.msra.mxu0 0.0
  %287 = vmatprep.subr.mxu0 0.0
  %288 = vmatpush1.msra.mxu0 0.0
  %289 = vmatprep.subr.mxu0 0.0
  %290 = vmatpush1.msra.mxu0 0.0
  %291 = vmatprep.subr.mxu0 0.0
  %292 = vmatpush1.msra.mxu0 0.0
  %293 = vmatprep.subr.mxu0 0.0
  %294 = vmatpush1.msra.mxu0 0.0
  %295 = vmatprep.subr.mxu0 0.0
  %296 = vmatpush1.msra.mxu0 0.0
  %297 = vmatprep.subr.mxu0 0.0
  %298 = vmatpush1.msra.mxu0 0.0
  %299 = vmatprep.subr.mxu0 0.0
  %300 = vmatpush1.msra.mxu0 0.0
  %301 = vmatprep.subr.mxu0 0.0
  %302 = vmatpush1.msra.mxu0 0.0
  %303 = vmatprep.subr.mxu0 0.0
  %304 = vmatpush1.msra.mxu0 0.0
  %305 = vmatprep.subr.mxu0 0.0
  %306 = vmatpush1.msra.mxu0 0.0
  %307 = vmatprep.subr.mxu0 0.0
  %308 = vmatpush1.msra.mxu0 0.0
  %309 = vmatprep.subr.mxu0 0.0
  %310 = vmatpush1.msra.mxu0 0.0
  %311 = vmatprep.subr.mxu0 0.0
  %312 = vmatpush1.msra.mxu0 0.0
  %313 = vmatprep.subr.mxu0 0.0
  %314 = vmatpush1.msra.mxu0 0.0
  %315 = vmatprep.subr.mxu0 0.0
  %316 = vmatpush1.msra.mxu0 0.0
  %317 = vmatprep.subr.mxu0 0.0
  %318 = vmatpush1.msra.mxu0 0.0
  %319 = vmatprep.subr.mxu0 0.0
  %320 = vmatpush1.msra.mxu0 0.0
  %321 = vmatprep.subr.mxu0 0.0
  %322 = vmatpush1.msra.mxu0 0.0
  %323 = vmatprep.subr.mxu0 0.0
  %324 = vmatpush1.msra.mxu0 0.0
  %325 = vmatprep.subr.mxu0 0.0
  %326 = vmatpush1.msra.mxu0 0.0
  %327 = vmatprep.mubr.f32.mxu0 0.0
  %328 = vmatmul.mubr.f32.gmra.mrb[0].mxu0 %v252
  %v329 = vpop.f32.mrb[0].mxu0
  %v330 = vadd.f32 %v233, %v329
  %v331 = vpop.f32.mrb[0].mxu0
  %332 = vmatprep.mubr.f32.mxu0 0.0
  %333 = vmatmul.mubr.f32.gmra.mrb[0].mxu0 %v255
  %v334 = vpop.f32.mrb[0].mxu0
  %v335 = vadd.f32 %v238, %v334
  %v336 = vpop.f32.mrb[0].mxu0
  %337 = vmatprep.mubr.f32.mxu0 0.0
  %338 = vmatmul.mubr.f32.gmra.mrb[0].mxu0 %v258
  %v339 = vpop.f32.mrb[0].mxu0
  %v340 = vadd.f32 %v243, %v339
  %v341 = vpop.f32.mrb[0].mxu0
  %342 = vmatprep.mubr.f32.mxu0 0.0
  %343 = vmatmul.mubr.f32.gmra.mrb[0].mxu0 %v261
  %v344 = vpop.f32.mrb[0].mxu0
  %v345 = vadd.f32 %v248, %v344
  %v346 = vpop.f32.mrb[0].mxu0
  %347 = vdwg.mxu0
  %v348 = vtanh.pop %v330
  %v349 = vtanh.pop %v335
  %v350 = vtanh.pop %v340
  %v351 = vtanh.pop %v345
  %v352 = vld [vmem:[%s5] sm:$0x1]
  %v353 = vld [vmem:[#allocation2] sm:$0x1]
  %355 = vset.pattern.permute.xlu0 0
  %356 = vperm.xlu0 %355, %v353
  %v357 = vpop.permute.xlu0 %356
  %v359 = vlaneseq
  %v360 = vshrl.u32 %v359, 7
  %v361 = vsub.s32 0, %v360
  %v362 = vrot.slane %v357, %v361
  %v364 = vsel %vm250, %v352, 0
  %366 = vmatprep.subr.mxu0 0.0
  %367 = vmatpush1.msra.mxu0 %v348
  %368 = vmatprep.subr.mxu0 0.0
  %369 = vmatpush1.msra.mxu0 %v349
  %370 = vmatprep.subr.mxu0 0.0
  %371 = vmatpush1.msra.mxu0 %v350
  %372 = vmatprep.subr.mxu0 0.0
  %373 = vmatpush1.msra.mxu0 %v351
  %374 = vmatprep.subr.mxu0 0.0
  %375 = vmatpush1.msra.mxu0 0.0
  %376 = vmatprep.subr.mxu0 0.0
  %377 = vmatpush1.msra.mxu0 0.0
  %378 = vmatprep.subr.mxu0 0.0
  %379 = vmatpush1.msra.mxu0 0.0
  %380 = vmatprep.subr.mxu0 0.0
  %381 = vmatpush1.msra.mxu0 0.0
  %382 = vmatprep.subr.mxu0 0.0
  %383 = vmatpush1.msra.mxu0 0.0
  %384 = vmatprep.subr.mxu0 0.0
  %385 = vmatpush1.msra.mxu0 0.0
  %386 = vmatprep.subr.mxu0 0.0
  %387 = vmatpush1.msra.mxu0 0.0
  %388 = vmatprep.subr.mxu0 0.0
  %389 = vmatpush1.msra.mxu0 0.0
  %390 = vmatprep.subr.mxu0 0.0
  %391 = vmatpush1.msra.mxu0 0.0
  %392 = vmatprep.subr.mxu0 0.0
  %393 = vmatpush1.msra.mxu0 0.0
  %394 = vmatprep.subr.mxu0 0.0
  %395 = vmatpush1.msra.mxu0 0.0
  %396 = vmatprep.subr.mxu0 0.0
  %397 = vmatpush1.msra.mxu0 0.0
  %398 = vmatprep.subr.mxu0 0.0
  %399 = vmatpush1.msra.mxu0 0.0
  %400 = vmatprep.subr.mxu0 0.0
  %401 = vmatpush1.msra.mxu0 0.0
  %402 = vmatprep.subr.mxu0 0.0
  %403 = vmatpush1.msra.mxu0 0.0
  %404 = vmatprep.subr.mxu0 0.0
  %405 = vmatpush1.msra.mxu0 0.0
  %406 = vmatprep.subr.mxu0 0.0
  %407 = vmatpush1.msra.mxu0 0.0
  %408 = vmatprep.subr.mxu0 0.0
  %409 = vmatpush1.msra.mxu0 0.0
  %410 = vmatprep.subr.mxu0 0.0
  %411 = vmatpush1.msra.mxu0 0.0
  %412 = vmatprep.subr.mxu0 0.0
  %413 = vmatpush1.msra.mxu0 0.0
  %414 = vmatprep.subr.mxu0 0.0
  %415 = vmatpush1.msra.mxu0 0.0
  %416 = vmatprep.subr.mxu0 0.0
  %417 = vmatpush1.msra.mxu0 0.0
  %418 = vmatprep.subr.mxu0 0.0
  %419 = vmatpush1.msra.mxu0 0.0
  %420 = vmatprep.subr.mxu0 0.0
  %421 = vmatpush1.msra.mxu0 0.0
  %422 = vmatprep.subr.mxu0 0.0
  %423 = vmatpush1.msra.mxu0 0.0
  %424 = vmatprep.subr.mxu0 0.0
  %425 = vmatpush1.msra.mxu0 0.0
  %426 = vmatprep.subr.mxu0 0.0
  %427 = vmatpush1.msra.mxu0 0.0
  %428 = vmatprep.subr.mxu0 0.0
  %429 = vmatpush1.msra.mxu0 0.0
  %430 = vmatprep.mubr.f32.mxu0 0.0
  %431 = vmatmul.mubr.f32.gmra.mrb[0].mxu0 %v364
  %v432 = vpop.f32.mrb[0].mxu0
  %v433 = vadd.f32 %v362, %v432
  %v434 = vpop.f32.mrb[0].mxu0
  %435 = vdwg.mxu0
  %436 = vst [vmem:[%s7] sm:$0x1] %v433
  // Predicated region
  $region30: #{mlp_critic_forward.1} parent=0 // pred_check
    _
  $region31: #{mlp_critic_forward.1} parent=0 // pred_check_branch
    %438 = sbr.rel (0) target = $region33
  $region32: #{mlp_critic_forward.1} parent=0 // pred_region
    _
  $region33: #{mlp_critic_forward.1} parent=0 // pred_fallthru
    _
  // Predicated region
  $region34: #{mlp_critic_forward.1} parent=0 // pred_check
    _
  $region35: #{mlp_critic_forward.1} parent=0 // pred_check_branch
    %440 = sbr.rel (0) target = $region37
  $region36: #{mlp_critic_forward.1} parent=0 // pred_region
    _
  $region37: #{mlp_critic_forward.1} parent=0 // pred_fallthru
    _

</llo_original>
